<compile_context>
chip_gen: v5e
topology: v5e:2x2
jax: 0.10.0
libtpu: 0.0.40
codegen_flags: <defaults>
</compile_context>

<pallas_src>
import jax
import jax.numpy as jnp
import numpy as np
from jax.experimental import pallas as pl
from jax.experimental.pallas import tpu as pltpu

BN_EPS = 1e-5


def _round_up(x, m):
    return (x + m - 1) // m * m


# --------------------------------------------------------------------------
# Static layout of the single packed parameter slab (weights + tiny vectors).
# All row offsets are 8-aligned (sublane tile) and lane offsets are 0.
# --------------------------------------------------------------------------
def _param_layout(encoder_dim):
    dim = len(encoder_dim) - 1
    decoder_dim = list(reversed(encoder_dim))

    # Weight shapes (in, out), kernel order: encoder 0..dim-1, decoder 0..dim-1
    wdims = [(encoder_dim[i], encoder_dim[i + 1]) for i in range(dim)]
    wdims += [(decoder_dim[i], decoder_dim[i + 1]) for i in range(dim)]

    # Per-layer vectors (one row each, spaced 8 rows apart for tile-aligned views)
    vkeys = []
    for i in range(dim - 1):
        vkeys.append((("enc_gamma", i), encoder_dim[i + 1]))
        vkeys.append((("enc_beta", i), encoder_dim[i + 1]))
    vkeys.append((("enc_bias_last",), encoder_dim[dim]))
    for i in range(dim):
        vkeys.append((("dec_gamma", i), decoder_dim[i + 1]))
        vkeys.append((("dec_beta", i), decoder_dim[i + 1]))

    max_width = max([do for _, do in wdims] + [w for _, w in vkeys])
    lanes = _round_up(max(max_width, 128), 128)

    row = 0
    w_layout = []
    for din, dout in wdims:
        w_layout.append((row, din, dout))
        row += _round_up(din, 8)
    v_layout = {}
    for key, width in vkeys:
        v_layout[key] = (row, width)
        row += 8                       # one row used, 8-aligned spacing
    return w_layout, v_layout, row, lanes


# --------------------------------------------------------------------------
# Kernel factory (static layer structure + slab layout closed over).
# Refs: x, param_slab, packed_out.
# --------------------------------------------------------------------------
def _make_kernel(encoder_dim, w_layout, v_layout, out_lanes):
    dim = len(encoder_dim) - 1
    xhat_dim = encoder_dim[0]
    latent_dim = encoder_dim[-1]

    def _bn(h, gamma, beta, relu):
        # Training-mode BatchNorm1d: batch mean, biased variance, eps=1e-5.
        # Two-pass (center first) — no catastrophic cancellation.
        mean = jnp.mean(h, axis=0, keepdims=True)
        c = h - mean
        var = jnp.mean(c * c, axis=0, keepdims=True)
        out = c * (gamma * jax.lax.rsqrt(var + BN_EPS)) + beta
        if relu:
            out = jnp.maximum(out, 0.0)
        return out

    def kernel(x_ref, p_ref, out_ref):
        def weight(i):
            off, din, dout = w_layout[i]
            return p_ref[off:off + din, :dout]          # static 8-aligned view

        def vec(key):
            off, width = v_layout[key]
            return p_ref[off:off + 1, :width]           # static 8-aligned row

        h = x_ref[...].astype(jnp.float32)

        # ---------------- encoder ----------------
        for i in range(dim):
            # Linear bias dropped whenever BN follows: training-mode BN
            # subtracts the batch mean, which cancels the constant exactly.
            h = jnp.dot(h, weight(i), preferred_element_type=jnp.float32)
            if i < dim - 1:
                h = _bn(h, vec(("enc_gamma", i)), vec(("enc_beta", i)),
                        relu=True)
            else:
                h = h + vec(("enc_bias_last",))          # pre-softmax bias kept

        # Softmax over features (dim=1), numerically stable, EXACT divide
        # (approx reciprocal error gets amplified by the decoder BatchNorms).
        m = jnp.max(h, axis=1, keepdims=True)
        e = jnp.exp(h - m)
        latent = e / jnp.sum(e, axis=1, keepdims=True)

        # ---------------- decoder ----------------
        h = latent
        for i in range(dim):
            # Every decoder Linear is followed by BN -> bias dropped.
            h = jnp.dot(h, weight(dim + i), preferred_element_type=jnp.float32)
            h = _bn(h, vec(("dec_gamma", i)), vec(("dec_beta", i)),
                    relu=(i < dim - 1))                  # final ReLU removed

        # Single lane-dense store: [ x_hat | latent | zero pad ] -> (B, 128k).
        b = h.shape[0]
        pad = out_lanes - (xhat_dim + latent_dim)
        parts = [h.astype(out_ref.dtype), latent.astype(out_ref.dtype)]
        if pad > 0:
            parts.append(jnp.zeros((b, pad), out_ref.dtype))
        out_ref[...] = jnp.concatenate(parts, axis=1)

    return kernel


# --------------------------------------------------------------------------
# Parameter init mirroring the PyTorch module (flat list in module order).
# --------------------------------------------------------------------------
def init_params(encoder_dim, key):
    dim = len(encoder_dim) - 1
    decoder_dim = list(reversed(encoder_dim))

    def linear(key, d_in, d_out):
        kw, kb = jax.random.split(key)
        bound = 1.0 / np.sqrt(d_in)
        w = jax.random.uniform(kw, (d_in, d_out), jnp.float32, -bound, bound)
        b = jax.random.uniform(kb, (1, d_out), jnp.float32, -bound, bound)
        return w, b

    params = []
    keys = jax.random.split(key, 2 * dim)
    for i in range(dim):                               # encoder
        w, b = linear(keys[i], encoder_dim[i], encoder_dim[i + 1])
        params += [w, b]
        if i < dim - 1:
            params += [jnp.ones((1, encoder_dim[i + 1]), jnp.float32),
                       jnp.zeros((1, encoder_dim[i + 1]), jnp.float32)]
    for i in range(dim):                               # decoder
        w, b = linear(keys[dim + i], decoder_dim[i], decoder_dim[i + 1])
        params += [w, b]
        params += [jnp.ones((1, decoder_dim[i + 1]), jnp.float32),
                   jnp.zeros((1, decoder_dim[i + 1]), jnp.float32)]
    return params


# --------------------------------------------------------------------------
# Pack ALL parameters into one lane-dense (rows, 128k) f32 slab -> one DMA.
# --------------------------------------------------------------------------
def pack_param_slab(params, encoder_dim):
    dim = len(encoder_dim) - 1
    w_layout, v_layout, rows, lanes = _param_layout(encoder_dim)
    slab = jnp.zeros((rows, lanes), jnp.float32)

    def put_w(slab, idx, w):
        off, din, dout = w_layout[idx]
        return slab.at[off:off + din, :dout].set(w.astype(jnp.float32))

    def put_v(slab, key, v):
        off, width = v_layout[key]
        return slab.at[off, :width].set(jnp.reshape(v, (-1,)).astype(jnp.float32))

    p, widx = 0, 0
    for i in range(dim):                               # encoder
        w, b = params[p], params[p + 1]; p += 2
        slab = put_w(slab, widx, w); widx += 1
        if i < dim - 1:
            g, bt = params[p], params[p + 1]; p += 2
            slab = put_v(slab, ("enc_gamma", i), g)
            slab = put_v(slab, ("enc_beta", i), bt)
            # Linear bias dropped: training-mode BN cancels it exactly.
        else:
            slab = put_v(slab, ("enc_bias_last",), b)
    for i in range(dim):                               # decoder
        w, b = params[p], params[p + 1]; p += 2
        slab = put_w(slab, widx, w); widx += 1
        g, bt = params[p], params[p + 1]; p += 2
        slab = put_v(slab, ("dec_gamma", i), g)
        slab = put_v(slab, ("dec_beta", i), bt)
        # Decoder Linear bias dropped (BN always follows).
    return slab


def autoencoder_forward(x, params, encoder_dim):
    B = x.shape[0]
    dim = len(encoder_dim) - 1
    decoder_dim = list(reversed(encoder_dim))
    xhat_dim = encoder_dim[0]
    latent_dim = encoder_dim[-1]
    out_lanes = _round_up(xhat_dim + latent_dim, 128)

    w_layout, v_layout, _, _ = _param_layout(encoder_dim)
    slab = pack_param_slab(params, encoder_dim)
    kernel = _make_kernel(encoder_dim, w_layout, v_layout, out_lanes)

    # Cost hint + tight VMEM claim (working set is ~200 KiB, not 32 MiB).
    wdims = [(encoder_dim[i], encoder_dim[i + 1]) for i in range(dim)] + \
            [(decoder_dim[i], decoder_dim[i + 1]) for i in range(dim)]
    flops = 2 * B * sum(di * do for di, do in wdims)
    bn_feats = sum(encoder_dim[i + 1] for i in range(dim - 1)) + \
               sum(decoder_dim[i + 1] for i in range(dim))
    transcendentals = B * latent_dim + bn_feats
    io_bytes = 4 * (int(x.size) + int(slab.size) + B * out_lanes)
    vmem_limit = int(max(2 * 1024 * 1024, 4 * io_bytes))

    # TODO(synk): for large batches, switch to a batch-tiled grid with a
    # two-phase BN (accumulate sum/sumsq, then normalize) so training-mode
    # stats stay exact while pipelining / megacore sharding kicks in.
    packed = pl.pallas_call(
        kernel,
        out_shape=jax.ShapeDtypeStruct((B, out_lanes), jnp.float32),
        in_specs=[pl.BlockSpec(memory_space=pltpu.MemorySpace.VMEM)] * 2,
        out_specs=pl.BlockSpec(memory_space=pltpu.MemorySpace.VMEM),
        compiler_params=pltpu.CompilerParams(vmem_limit_bytes=vmem_limit),
        cost_estimate=pl.CostEstimate(flops=flops,
                                      transcendentals=transcendentals,
                                      bytes_accessed=io_bytes),
    )(x, slab)

    x_hat = packed[:, :xhat_dim]
    latent = packed[:, xhat_dim:xhat_dim + latent_dim]
    return x_hat, latent


# --------------------------------------------------------------------------
# Ground-truth reference in numpy float64 (full PyTorch training-mode
# semantics, biases included, exact softmax).  float64 removes any dependence
# on XLA's default (bf16) f32-matmul precision on TPU, which caused the
# previous mismatch once BN divided by small batch stds.
# --------------------------------------------------------------------------
def reference_forward(x, params, encoder_dim):
    dim = len(encoder_dim) - 1
    ps = [np.asarray(p, np.float64) for p in params]
    h = np.asarray(x, np.float64)

    def bn(h, g, b):
        mean = h.mean(axis=0, keepdims=True)
        var = ((h - mean) ** 2).mean(axis=0, keepdims=True)
        return (h - mean) / np.sqrt(var + BN_EPS) * g + b

    p = 0
    for i in range(dim):
        w, b = ps[p], ps[p + 1]; p += 2
        h = h @ w + b
        if i < dim - 1:
            g, bt = ps[p], ps[p + 1]; p += 2
            h = np.maximum(bn(h, g, bt), 0.0)
    m = h.max(axis=1, keepdims=True)
    e = np.exp(h - m)
    h = e / e.sum(axis=1, keepdims=True)
    latent = h
    for i in range(dim):
        w, b = ps[p], ps[p + 1]; p += 2
        h = h @ w + b
        g, bt = ps[p], ps[p + 1]; p += 2
        h = bn(h, g, bt)
        if i < dim - 1:
            h = np.maximum(h, 0.0)
    return h, latent


if __name__ == "__main__":
    encoder_dim = [32, 64, 32, 16]   # input_dim -> ... -> latent_dim
    B = 8

    key = jax.random.PRNGKey(0)
    kx, kp = jax.random.split(key)
    x = jax.random.normal(kx, (B, encoder_dim[0]), jnp.float32)
    params = init_params(encoder_dim, kp)

    x_hat, latent = autoencoder_forward(x, params, encoder_dim)
    jax.block_until_ready((x_hat, latent))

    x_hat_ref, latent_ref = reference_forward(x, params, encoder_dim)

    # Kernel is full-f32 throughout (exact softmax divide, two-pass BN var);
    # x_hat tolerance leaves headroom for training-mode BN dividing by small
    # batch stds (>= sqrt(eps)), which amplifies benign f32 rounding.
    np.testing.assert_allclose(np.asarray(latent), latent_ref,
                               rtol=1e-3, atol=2e-4)
    np.testing.assert_allclose(np.asarray(x_hat), x_hat_ref,
                               rtol=1e-2, atol=2e-3)

    print("KERNEL_OK")
</pallas_src>

<mosaic_0001>
module attributes {stable_mosaic.version = 11 : i64} {
  func.func @kernel(%arg0: memref<8x32xf32, #tpu.memory_space<vmem>>, %arg1: memref<328x128xf32, #tpu.memory_space<vmem>>, %arg2: memref<8x128xf32, #tpu.memory_space<vmem>>) attributes {dimension_semantics = [], scalar_prefetch = 0 : i64, scratch_operands = 0 : i64, tpu.core_type = #tpu.core_type<tc>} {
    %c0 = arith.constant 0 : index
    %c0_0 = arith.constant 0 : index
    %0 = vector.load %arg0[%c0, %c0_0] : memref<8x32xf32, #tpu.memory_space<vmem>>, vector<8x32xf32>
    %c0_1 = arith.constant 0 : index
    %c0_2 = arith.constant 0 : index
    %1 = vector.load %arg1[%c0_1, %c0_2] : memref<328x128xf32, #tpu.memory_space<vmem>>, vector<32x64xf32>
    %cst = arith.constant dense<0.000000e+00> : vector<8x64xf32>
    %2 = tpu.matmul %0, %1, %cst {dimension_numbers = #tpu.dot_dimension_numbers<[1], [0], [0], [1], [0, 0, 1, 1], [], []>} : vector<8x32xf32>, vector<32x64xf32>, vector<8x64xf32> -> vector<8x64xf32>
    %c240 = arith.constant 240 : index
    %c0_3 = arith.constant 0 : index
    %3 = vector.load %arg1[%c240, %c0_3] : memref<328x128xf32, #tpu.memory_space<vmem>>, vector<1x64xf32>
    %c248 = arith.constant 248 : index
    %c0_4 = arith.constant 0 : index
    %4 = vector.load %arg1[%c248, %c0_4] : memref<328x128xf32, #tpu.memory_space<vmem>>, vector<1x64xf32>
    %cst_5 = arith.constant dense<0.000000e+00> : vector<64xf32>
    %5 = vector.multi_reduction <add>, %2, %cst_5 [0] : vector<8x64xf32> to vector<64xf32>
    %6 = vector.shape_cast %5 : vector<64xf32> to vector<1x64xf32>
    %cst_6 = arith.constant 8.000000e+00 : f32
    %7 = vector.broadcast %cst_6 : f32 to vector<1x64xf32>
    %8 = arith.divf %6, %7 : vector<1x64xf32>
    %9 = vector.broadcast %8 : vector<1x64xf32> to vector<8x64xf32>
    %10 = arith.subf %2, %9 : vector<8x64xf32>
    %11 = arith.mulf %10, %10 : vector<8x64xf32>
    %cst_7 = arith.constant dense<0.000000e+00> : vector<64xf32>
    %12 = vector.multi_reduction <add>, %11, %cst_7 [0] : vector<8x64xf32> to vector<64xf32>
    %13 = vector.shape_cast %12 : vector<64xf32> to vector<1x64xf32>
    %cst_8 = arith.constant 8.000000e+00 : f32
    %14 = vector.broadcast %cst_8 : f32 to vector<1x64xf32>
    %15 = arith.divf %13, %14 : vector<1x64xf32>
    %cst_9 = arith.constant 9.99999974E-6 : f32
    %16 = vector.broadcast %cst_9 : f32 to vector<1x64xf32>
    %17 = arith.addf %15, %16 : vector<1x64xf32>
    %18 = math.rsqrt %17 : vector<1x64xf32>
    %19 = arith.mulf %3, %18 : vector<1x64xf32>
    %20 = vector.broadcast %19 : vector<1x64xf32> to vector<8x64xf32>
    %21 = arith.mulf %10, %20 : vector<8x64xf32>
    %22 = vector.broadcast %4 : vector<1x64xf32> to vector<8x64xf32>
    %23 = arith.addf %21, %22 : vector<8x64xf32>
    %cst_10 = arith.constant 0.000000e+00 : f32
    %24 = vector.broadcast %cst_10 : f32 to vector<8x64xf32>
    %25 = arith.maximumf %23, %24 : vector<8x64xf32>
    %c32 = arith.constant 32 : index
    %c0_11 = arith.constant 0 : index
    %26 = vector.load %arg1[%c32, %c0_11] : memref<328x128xf32, #tpu.memory_space<vmem>>, vector<64x32xf32>
    %cst_12 = arith.constant dense<0.000000e+00> : vector<8x32xf32>
    %27 = tpu.matmul %25, %26, %cst_12 {dimension_numbers = #tpu.dot_dimension_numbers<[1], [0], [0], [1], [0, 0, 1, 1], [], []>} : vector<8x64xf32>, vector<64x32xf32>, vector<8x32xf32> -> vector<8x32xf32>
    %c256 = arith.constant 256 : index
    %c0_13 = arith.constant 0 : index
    %28 = vector.load %arg1[%c256, %c0_13] : memref<328x128xf32, #tpu.memory_space<vmem>>, vector<1x32xf32>
    %c264 = arith.constant 264 : index
    %c0_14 = arith.constant 0 : index
    %29 = vector.load %arg1[%c264, %c0_14] : memref<328x128xf32, #tpu.memory_space<vmem>>, vector<1x32xf32>
    %cst_15 = arith.constant dense<0.000000e+00> : vector<32xf32>
    %30 = vector.multi_reduction <add>, %27, %cst_15 [0] : vector<8x32xf32> to vector<32xf32>
    %31 = vector.shape_cast %30 : vector<32xf32> to vector<1x32xf32>
    %cst_16 = arith.constant 8.000000e+00 : f32
    %32 = vector.broadcast %cst_16 : f32 to vector<1x32xf32>
    %33 = arith.divf %31, %32 : vector<1x32xf32>
    %34 = vector.broadcast %33 : vector<1x32xf32> to vector<8x32xf32>
    %35 = arith.subf %27, %34 : vector<8x32xf32>
    %36 = arith.mulf %35, %35 : vector<8x32xf32>
    %cst_17 = arith.constant dense<0.000000e+00> : vector<32xf32>
    %37 = vector.multi_reduction <add>, %36, %cst_17 [0] : vector<8x32xf32> to vector<32xf32>
    %38 = vector.shape_cast %37 : vector<32xf32> to vector<1x32xf32>
    %cst_18 = arith.constant 8.000000e+00 : f32
    %39 = vector.broadcast %cst_18 : f32 to vector<1x32xf32>
    %40 = arith.divf %38, %39 : vector<1x32xf32>
    %cst_19 = arith.constant 9.99999974E-6 : f32
    %41 = vector.broadcast %cst_19 : f32 to vector<1x32xf32>
    %42 = arith.addf %40, %41 : vector<1x32xf32>
    %43 = math.rsqrt %42 : vector<1x32xf32>
    %44 = arith.mulf %28, %43 : vector<1x32xf32>
    %45 = vector.broadcast %44 : vector<1x32xf32> to vector<8x32xf32>
    %46 = arith.mulf %35, %45 : vector<8x32xf32>
    %47 = vector.broadcast %29 : vector<1x32xf32> to vector<8x32xf32>
    %48 = arith.addf %46, %47 : vector<8x32xf32>
    %cst_20 = arith.constant 0.000000e+00 : f32
    %49 = vector.broadcast %cst_20 : f32 to vector<8x32xf32>
    %50 = arith.maximumf %48, %49 : vector<8x32xf32>
    %c96 = arith.constant 96 : index
    %c0_21 = arith.constant 0 : index
    %51 = vector.load %arg1[%c96, %c0_21] : memref<328x128xf32, #tpu.memory_space<vmem>>, vector<32x16xf32>
    %cst_22 = arith.constant dense<0.000000e+00> : vector<8x16xf32>
    %52 = tpu.matmul %50, %51, %cst_22 {dimension_numbers = #tpu.dot_dimension_numbers<[1], [0], [0], [1], [0, 0, 1, 1], [], []>} : vector<8x32xf32>, vector<32x16xf32>, vector<8x16xf32> -> vector<8x16xf32>
    %c272 = arith.constant 272 : index
    %c0_23 = arith.constant 0 : index
    %53 = vector.load %arg1[%c272, %c0_23] : memref<328x128xf32, #tpu.memory_space<vmem>>, vector<1x16xf32>
    %54 = vector.broadcast %53 : vector<1x16xf32> to vector<8x16xf32>
    %55 = arith.addf %52, %54 : vector<8x16xf32>
    %cst_24 = arith.constant dense<0xFF800000> : vector<8xf32>
    %56 = vector.multi_reduction <maximumf>, %55, %cst_24 [1] : vector<8x16xf32> to vector<8xf32>
    %57 = vector.shape_cast %56 : vector<8xf32> to vector<8x1xf32>
    %58 = vector.broadcast %57 : vector<8x1xf32> to vector<8x16xf32>
    %59 = arith.subf %55, %58 : vector<8x16xf32>
    %60 = math.exp %59 : vector<8x16xf32>
    %cst_25 = arith.constant dense<0.000000e+00> : vector<8xf32>
    %61 = vector.multi_reduction <add>, %60, %cst_25 [1] : vector<8x16xf32> to vector<8xf32>
    %62 = vector.shape_cast %61 : vector<8xf32> to vector<8x1xf32>
    %63 = vector.broadcast %62 : vector<8x1xf32> to vector<8x16xf32>
    %64 = arith.divf %60, %63 : vector<8x16xf32>
    %c128 = arith.constant 128 : index
    %c0_26 = arith.constant 0 : index
    %65 = vector.load %arg1[%c128, %c0_26] : memref<328x128xf32, #tpu.memory_space<vmem>>, vector<16x32xf32>
    %cst_27 = arith.constant dense<0.000000e+00> : vector<8x32xf32>
    %66 = tpu.matmul %64, %65, %cst_27 {dimension_numbers = #tpu.dot_dimension_numbers<[1], [0], [0], [1], [0, 0, 1, 1], [], []>} : vector<8x16xf32>, vector<16x32xf32>, vector<8x32xf32> -> vector<8x32xf32>
    %c280 = arith.constant 280 : index
    %c0_28 = arith.constant 0 : index
    %67 = vector.load %arg1[%c280, %c0_28] : memref<328x128xf32, #tpu.memory_space<vmem>>, vector<1x32xf32>
    %c288 = arith.constant 288 : index
    %c0_29 = arith.constant 0 : index
    %68 = vector.load %arg1[%c288, %c0_29] : memref<328x128xf32, #tpu.memory_space<vmem>>, vector<1x32xf32>
    %cst_30 = arith.constant dense<0.000000e+00> : vector<32xf32>
    %69 = vector.multi_reduction <add>, %66, %cst_30 [0] : vector<8x32xf32> to vector<32xf32>
    %70 = vector.shape_cast %69 : vector<32xf32> to vector<1x32xf32>
    %cst_31 = arith.constant 8.000000e+00 : f32
    %71 = vector.broadcast %cst_31 : f32 to vector<1x32xf32>
    %72 = arith.divf %70, %71 : vector<1x32xf32>
    %73 = vector.broadcast %72 : vector<1x32xf32> to vector<8x32xf32>
    %74 = arith.subf %66, %73 : vector<8x32xf32>
    %75 = arith.mulf %74, %74 : vector<8x32xf32>
    %cst_32 = arith.constant dense<0.000000e+00> : vector<32xf32>
    %76 = vector.multi_reduction <add>, %75, %cst_32 [0] : vector<8x32xf32> to vector<32xf32>
    %77 = vector.shape_cast %76 : vector<32xf32> to vector<1x32xf32>
    %cst_33 = arith.constant 8.000000e+00 : f32
    %78 = vector.broadcast %cst_33 : f32 to vector<1x32xf32>
    %79 = arith.divf %77, %78 : vector<1x32xf32>
    %cst_34 = arith.constant 9.99999974E-6 : f32
    %80 = vector.broadcast %cst_34 : f32 to vector<1x32xf32>
    %81 = arith.addf %79, %80 : vector<1x32xf32>
    %82 = math.rsqrt %81 : vector<1x32xf32>
    %83 = arith.mulf %67, %82 : vector<1x32xf32>
    %84 = vector.broadcast %83 : vector<1x32xf32> to vector<8x32xf32>
    %85 = arith.mulf %74, %84 : vector<8x32xf32>
    %86 = vector.broadcast %68 : vector<1x32xf32> to vector<8x32xf32>
    %87 = arith.addf %85, %86 : vector<8x32xf32>
    %cst_35 = arith.constant 0.000000e+00 : f32
    %88 = vector.broadcast %cst_35 : f32 to vector<8x32xf32>
    %89 = arith.maximumf %87, %88 : vector<8x32xf32>
    %c144 = arith.constant 144 : index
    %c0_36 = arith.constant 0 : index
    %90 = vector.load %arg1[%c144, %c0_36] : memref<328x128xf32, #tpu.memory_space<vmem>>, vector<32x64xf32>
    %cst_37 = arith.constant dense<0.000000e+00> : vector<8x64xf32>
    %91 = tpu.matmul %89, %90, %cst_37 {dimension_numbers = #tpu.dot_dimension_numbers<[1], [0], [0], [1], [0, 0, 1, 1], [], []>} : vector<8x32xf32>, vector<32x64xf32>, vector<8x64xf32> -> vector<8x64xf32>
    %c296 = arith.constant 296 : index
    %c0_38 = arith.constant 0 : index
    %92 = vector.load %arg1[%c296, %c0_38] : memref<328x128xf32, #tpu.memory_space<vmem>>, vector<1x64xf32>
    %c304 = arith.constant 304 : index
    %c0_39 = arith.constant 0 : index
    %93 = vector.load %arg1[%c304, %c0_39] : memref<328x128xf32, #tpu.memory_space<vmem>>, vector<1x64xf32>
    %cst_40 = arith.constant dense<0.000000e+00> : vector<64xf32>
    %94 = vector.multi_reduction <add>, %91, %cst_40 [0] : vector<8x64xf32> to vector<64xf32>
    %95 = vector.shape_cast %94 : vector<64xf32> to vector<1x64xf32>
    %cst_41 = arith.constant 8.000000e+00 : f32
    %96 = vector.broadcast %cst_41 : f32 to vector<1x64xf32>
    %97 = arith.divf %95, %96 : vector<1x64xf32>
    %98 = vector.broadcast %97 : vector<1x64xf32> to vector<8x64xf32>
    %99 = arith.subf %91, %98 : vector<8x64xf32>
    %100 = arith.mulf %99, %99 : vector<8x64xf32>
    %cst_42 = arith.constant dense<0.000000e+00> : vector<64xf32>
    %101 = vector.multi_reduction <add>, %100, %cst_42 [0] : vector<8x64xf32> to vector<64xf32>
    %102 = vector.shape_cast %101 : vector<64xf32> to vector<1x64xf32>
    %cst_43 = arith.constant 8.000000e+00 : f32
    %103 = vector.broadcast %cst_43 : f32 to vector<1x64xf32>
    %104 = arith.divf %102, %103 : vector<1x64xf32>
    %cst_44 = arith.constant 9.99999974E-6 : f32
    %105 = vector.broadcast %cst_44 : f32 to vector<1x64xf32>
    %106 = arith.addf %104, %105 : vector<1x64xf32>
    %107 = math.rsqrt %106 : vector<1x64xf32>
    %108 = arith.mulf %92, %107 : vector<1x64xf32>
    %109 = vector.broadcast %108 : vector<1x64xf32> to vector<8x64xf32>
    %110 = arith.mulf %99, %109 : vector<8x64xf32>
    %111 = vector.broadcast %93 : vector<1x64xf32> to vector<8x64xf32>
    %112 = arith.addf %110, %111 : vector<8x64xf32>
    %cst_45 = arith.constant 0.000000e+00 : f32
    %113 = vector.broadcast %cst_45 : f32 to vector<8x64xf32>
    %114 = arith.maximumf %112, %113 : vector<8x64xf32>
    %c176 = arith.constant 176 : index
    %c0_46 = arith.constant 0 : index
    %115 = vector.load %arg1[%c176, %c0_46] : memref<328x128xf32, #tpu.memory_space<vmem>>, vector<64x32xf32>
    %cst_47 = arith.constant dense<0.000000e+00> : vector<8x32xf32>
    %116 = tpu.matmul %114, %115, %cst_47 {dimension_numbers = #tpu.dot_dimension_numbers<[1], [0], [0], [1], [0, 0, 1, 1], [], []>} : vector<8x64xf32>, vector<64x32xf32>, vector<8x32xf32> -> vector<8x32xf32>
    %c312 = arith.constant 312 : index
    %c0_48 = arith.constant 0 : index
    %117 = vector.load %arg1[%c312, %c0_48] : memref<328x128xf32, #tpu.memory_space<vmem>>, vector<1x32xf32>
    %c320 = arith.constant 320 : index
    %c0_49 = arith.constant 0 : index
    %118 = vector.load %arg1[%c320, %c0_49] : memref<328x128xf32, #tpu.memory_space<vmem>>, vector<1x32xf32>
    %cst_50 = arith.constant dense<0.000000e+00> : vector<32xf32>
    %119 = vector.multi_reduction <add>, %116, %cst_50 [0] : vector<8x32xf32> to vector<32xf32>
    %120 = vector.shape_cast %119 : vector<32xf32> to vector<1x32xf32>
    %cst_51 = arith.constant 8.000000e+00 : f32
    %121 = vector.broadcast %cst_51 : f32 to vector<1x32xf32>
    %122 = arith.divf %120, %121 : vector<1x32xf32>
    %123 = vector.broadcast %122 : vector<1x32xf32> to vector<8x32xf32>
    %124 = arith.subf %116, %123 : vector<8x32xf32>
    %125 = arith.mulf %124, %124 : vector<8x32xf32>
    %cst_52 = arith.constant dense<0.000000e+00> : vector<32xf32>
    %126 = vector.multi_reduction <add>, %125, %cst_52 [0] : vector<8x32xf32> to vector<32xf32>
    %127 = vector.shape_cast %126 : vector<32xf32> to vector<1x32xf32>
    %cst_53 = arith.constant 8.000000e+00 : f32
    %128 = vector.broadcast %cst_53 : f32 to vector<1x32xf32>
    %129 = arith.divf %127, %128 : vector<1x32xf32>
    %cst_54 = arith.constant 9.99999974E-6 : f32
    %130 = vector.broadcast %cst_54 : f32 to vector<1x32xf32>
    %131 = arith.addf %129, %130 : vector<1x32xf32>
    %132 = math.rsqrt %131 : vector<1x32xf32>
    %133 = arith.mulf %117, %132 : vector<1x32xf32>
    %134 = vector.broadcast %133 : vector<1x32xf32> to vector<8x32xf32>
    %135 = arith.mulf %124, %134 : vector<8x32xf32>
    %136 = vector.broadcast %118 : vector<1x32xf32> to vector<8x32xf32>
    %137 = arith.addf %135, %136 : vector<8x32xf32>
    %cst_55 = arith.constant 0.000000e+00 : f32
    %138 = vector.broadcast %cst_55 : f32 to vector<8x80xf32>
    %139 = tpu.concatenate %137, %64, %138 in 1 : vector<8x32xf32>, vector<8x16xf32>, vector<8x80xf32> -> vector<8x128xf32>
    %c0_56 = arith.constant 0 : index
    %c0_57 = arith.constant 0 : index
    %140 = vector.load %arg2[%c0_56, %c0_57] : memref<8x128xf32, #tpu.memory_space<vmem>>, vector<8x128xf32>
    tpu.vector_store %arg2[%c0_56, %c0_57], %139 {strides = array<i32>} : memref<8x128xf32, #tpu.memory_space<vmem>>, vector<8x128xf32>,
    return
  }
}

</mosaic_0001>

<llo_original>
// kernel: tpu_custom_call.1
$region0: #{tpu_custom_call.1}
  #allocation0 [shape = 'u32[]', space=smem, size = 0x4, offset = 0x4, fixed_abs, tag = 'smem constant byte address 0x4 - core index']
  #allocation1 [shape = 'u32[72,128]{1,0:T(1,128)}', space=vmem, size = 0x9000, scoped, tag = 'internal scratch']
  %s0 = inlined_call_operand.hbm [shape: f32[8,32], index: 0, kind: input, shape index: {}]
  %s1 = inlined_call_operand.hbm [shape: f32[328,128], index: 1, kind: input, shape index: {}]
  %s2 = inlined_call_operand.hbm [shape: f32[8,128], index: 2, kind: output, shape index: {}]
  %s3 = sld [smem:[#allocation0]]
  $region26: #{tpu_custom_call.1} parent=0
    _
  %s5 = ssub.s32 1, %s3
  %s6 = scalar_select 0, %s5, %s3
  $region1: #{tpu_custom_call.1} parent=0
    #allocation2 [shape = 'u8[4096]{0}', space=vmem, size = 0x1000, scoped, tag = 'input window, operand 0, single buffered']
    #allocation3 [shape = 's32[1]{0}', space=sflag, size = 0x4, scoped, tag = 'scoped memory for tpu_custom_call.1']
    #allocation4 [shape = 's32[1]{0}', space=sflag, size = 0x4, scoped, tag = 'scoped memory for tpu_custom_call.1']
    #allocation5 [shape = 'u8[167936]{0}', space=vmem, size = 0x29000, scoped, tag = 'input window, operand 1, single buffered']
    #allocation6 [shape = 's32[1]{0}', space=sflag, size = 0x4, scoped, tag = 'scoped memory for tpu_custom_call.1']
    #allocation7 [shape = 'u8[4096]{0}', space=vmem, size = 0x1000, scoped, tag = 'output window, operand 0, single buffered']
    %7 = vsyncpa [#allocation3], 0
    %8 = vsyncpa [#allocation6], 0
    %9 = vsyncpa [#allocation4], 0
    // Predicated region
    $region2: #{tpu_custom_call.1} parent=1 // pred_check
      _
    $region3: #{tpu_custom_call.1} parent=1 // pred_check_branch
      %11 = sbr.rel (0) target = $region5
    $region4: #{tpu_custom_call.1} parent=1 // pred_region
      %13 = vsyncadd [#allocation3], 0
      %s15 = sshll.u32 %s0, 4
      %s16 = int_to_ptr.hbm [resolvable:$true] %s15
      %s17 = sshll.u32 [#allocation2], 4
      %s18 = int_to_ptr.vmem [resolvable:$true] %s17
      %20 = dma.hbm_to_vmem [thread:$0]  %s16, 128, %s18, [#allocation3]
    $region5: #{tpu_custom_call.1} parent=1 // pred_fallthru
      _
    // Predicated region
    $region6: #{tpu_custom_call.1} parent=1 // pred_check
      _
    $region7: #{tpu_custom_call.1} parent=1 // pred_check_branch
      %22 = sbr.rel (0) target = $region9
    $region8: #{tpu_custom_call.1} parent=1 // pred_region
      %24 = vsyncadd [#allocation6], 0
      %s25 = sshll.u32 %s1, 4
      %s26 = int_to_ptr.hbm [resolvable:$true] %s25
      %s27 = sshll.u32 [#allocation5], 4
      %s28 = int_to_ptr.vmem [resolvable:$true] %s27
      %33 = dma.hbm_to_vmem [thread:$0]  %s26, 5248, %s28, [#allocation6], 128, 128, 8
    $region9: #{tpu_custom_call.1} parent=1 // pred_fallthru
      _
    // Predicated region
    $region10: #{tpu_custom_call.1} parent=1 // pred_check
      _
    $region11: #{tpu_custom_call.1} parent=1 // pred_check_branch
      %35 = sbr.rel (0) target = $region13
    $region12: #{tpu_custom_call.1} parent=1 // pred_region
      %37 = dma.done [#allocation3], 128
    $region13: #{tpu_custom_call.1} parent=1 // pred_fallthru
      _
    // Predicated region
    $region14: #{tpu_custom_call.1} parent=1 // pred_check
      _
    $region15: #{tpu_custom_call.1} parent=1 // pred_check_branch
      %39 = sbr.rel (0) target = $region17
    $region16: #{tpu_custom_call.1} parent=1 // pred_region
      %41 = dma.done [#allocation6], 5248
    $region17: #{tpu_custom_call.1} parent=1 // pred_fallthru
      _
    %v42 = vld [vmem:[#allocation2] sm:$0xff]
    %v43 = vld [vmem:[#allocation5] sm:$0xff]
    %v44 = vld [vmem:[#allocation5 + $0x8] sm:$0xff]
    %v45 = vld [vmem:[#allocation5 + $0x10] sm:$0xff]
    %v46 = vld [vmem:[#allocation5 + $0x18] sm:$0xff]
    %vm47 = vcmask 261120
    %v49 = vsel %vm47, %v42, 0
    %51 = vmatpush.msra.mxu0 0.0
    %52 = vmatpush.msra.mxu0 0.0
    %53 = vmatpush.msra.mxu0 0.0
    %54 = vmatpush.msra.mxu0 0.0
    %55 = vmatpush.msra.mxu0 0.0
    %56 = vmatpush.msra.mxu0 0.0
    %57 = vmatpush.msra.mxu0 0.0
    %58 = vmatpush.msra.mxu0 0.0
    %59 = vmatpush.msra.mxu0 0.0
    %60 = vmatpush.msra.mxu0 0.0
    %61 = vmatpush.msra.mxu0 0.0
    %62 = vmatpush.msra.mxu0 0.0
    %63 = vmatpush.msra.mxu0 %v46
    %64 = vmatpush.msra.mxu0 %v45
    %65 = vmatpush.msra.mxu0 %v44
    %66 = vmatpush.msra.mxu0 %v43
    %67 = vmatmul.f32.gmra.mxu0 %v49
    %v68 = vpop.f32.mrf.mxu0
    %v69 = vadd.f32 0.0, %v68
    %70 = vdwg.mxu0
    %v71 = vld [vmem:[#allocation5 + $0xf0] sm:$0x1]
    %v72 = vld [vmem:[#allocation5 + $0xf8] sm:$0x1]
    %vm73 = vcmask 523264
    %v74 = vsel %vm73, %v69, 0.0
    %v75 = vrot.slane %v74, 4
    %v76 = vadd.f32 %v74, %v75
    %v77 = vrot.slane %v76, 2
    %v78 = vadd.f32 %v76, %v77
    %v79 = vrot.slane %v78, 1
    %v80 = vadd.f32 %v78, %v79
    %v81 = vrcp.pop 8.0
    %v82 = vmul.f32 8.0, %v81
    %v83 = vsub.f32 1.0, %v82
    %v84 = vmul.f32 %v81, %v83
    %v85 = vadd.f32 %v81, %v84
    %vm86 = vweird.f32 %v81
    %v87 = vsel %vm86, %v81, %v85
    %v88 = vmul.f32 %v80, %v87
    %v89 = vsub.f32 %v69, %v88
    %v90 = vmul.f32 %v89, %v89
    %v91 = vsel %vm73, %v90, 0.0
    %v92 = vrot.slane %v91, 4
    %v93 = vadd.f32 %v91, %v92
    %v94 = vrot.slane %v93, 2
    %v95 = vadd.f32 %v93, %v94
    %v96 = vrot.slane %v95, 1
    %v97 = vadd.f32 %v95, %v96
    %v98 = vmul.f32 %v97, %v87
    %v99 = vadd.f32 %v98, 1e-05
    %v100 = vrsqrt.pop %v99
    %v101 = vmul.f32 %v100, %v99
    %v102 = vmul.f32 %v101, %v100
    %v103 = vmul.f32 0.5, %v102
    %v104 = vsub.f32 1.5, %v103
    %v105 = vmul.f32 %v100, %v104
    %vm106 = vweird.f32 %v99
    %vm107 = vweird.f32 %v100
    %vm108 = vmor %vm106, %vm107
    %v109 = vsel %vm108, %v100, %v105
    %v110 = vmul.f32 %v71, %v109
    %v111 = vperm.slane %v110, 0
    %v112 = vmul.f32 %v89, %v111
    %v113 = vperm.slane %v72, 0
    %v114 = vadd.f32 %v112, %v113
    %v115 = vmax.f32 %v114, 0.0
    %v116 = vld [vmem:[#allocation5 + $0x20] sm:$0xff]
    %v117 = vld [vmem:[#allocation5 + $0x28] sm:$0xff]
    %v118 = vld [vmem:[#allocation5 + $0x30] sm:$0xff]
    %v119 = vld [vmem:[#allocation5 + $0x38] sm:$0xff]
    %v120 = vld [vmem:[#allocation5 + $0x40] sm:$0xff]
    %v121 = vld [vmem:[#allocation5 + $0x48] sm:$0xff]
    %v122 = vld [vmem:[#allocation5 + $0x50] sm:$0xff]
    %v123 = vld [vmem:[#allocation5 + $0x58] sm:$0xff]
    %v125 = vsel %vm73, %v115, 0
    %127 = vmatpush.msra.mxu0 0.0
    %128 = vmatpush.msra.mxu0 0.0
    %129 = vmatpush.msra.mxu0 0.0
    %130 = vmatpush.msra.mxu0 0.0
    %131 = vmatpush.msra.mxu0 0.0
    %132 = vmatpush.msra.mxu0 0.0
    %133 = vmatpush.msra.mxu0 0.0
    %134 = vmatpush.msra.mxu0 0.0
    %135 = vmatpush.msra.mxu0 %v123
    %136 = vmatpush.msra.mxu0 %v122
    %137 = vmatpush.msra.mxu0 %v121
    %138 = vmatpush.msra.mxu0 %v120
    %139 = vmatpush.msra.mxu0 %v119
    %140 = vmatpush.msra.mxu0 %v118
    %141 = vmatpush.msra.mxu0 %v117
    %142 = vmatpush.msra.mxu0 %v116
    %143 = vmatmul.f32.gmra.mxu0 %v125
    %v144 = vpop.f32.mrf.mxu0
    %v145 = vadd.f32 0.0, %v144
    %146 = vdwg.mxu0
    %v147 = vld [vmem:[#allocation5 + $0x100] sm:$0x1]
    %v148 = vld [vmem:[#allocation5 + $0x108] sm:$0x1]
    %v149 = vsel %vm47, %v145, 0.0
    %v150 = vrot.slane %v149, 4
    %v151 = vadd.f32 %v149, %v150
    %v152 = vrot.slane %v151, 2
    %v153 = vadd.f32 %v151, %v152
    %v154 = vrot.slane %v153, 1
    %v155 = vadd.f32 %v153, %v154
    %v156 = vmul.f32 %v155, %v87
    %v157 = vsub.f32 %v145, %v156
    %v158 = vmul.f32 %v157, %v157
    %v159 = vsel %vm47, %v158, 0.0
    %v160 = vrot.slane %v159, 4
    %v161 = vadd.f32 %v159, %v160
    %v162 = vrot.slane %v161, 2
    %v163 = vadd.f32 %v161, %v162
    %v164 = vrot.slane %v163, 1
    %v165 = vadd.f32 %v163, %v164
    %v166 = vmul.f32 %v165, %v87
    %v167 = vadd.f32 %v166, 1e-05
    %v168 = vrsqrt.pop %v167
    %v169 = vmul.f32 %v168, %v167
    %v170 = vmul.f32 %v169, %v168
    %v171 = vmul.f32 0.5, %v170
    %v172 = vsub.f32 1.5, %v171
    %v173 = vmul.f32 %v168, %v172
    %vm174 = vweird.f32 %v167
    %vm175 = vweird.f32 %v168
    %vm176 = vmor %vm174, %vm175
    %v177 = vsel %vm176, %v168, %v173
    %v178 = vmul.f32 %v147, %v177
    %v179 = vperm.slane %v178, 0
    %v180 = vmul.f32 %v157, %v179
    %v181 = vperm.slane %v148, 0
    %v182 = vadd.f32 %v180, %v181
    %v183 = vmax.f32 %v182, 0.0
    %v184 = vld [vmem:[#allocation5 + $0x60] sm:$0xff]
    %v185 = vld [vmem:[#allocation5 + $0x68] sm:$0xff]
    %v186 = vld [vmem:[#allocation5 + $0x70] sm:$0xff]
    %v187 = vld [vmem:[#allocation5 + $0x78] sm:$0xff]
    %v188 = vld [vmem:[#allocation5 + $0x110] sm:$0x1]
    %v189 = vperm.slane %v188, 0
    %v191 = vsel %vm47, %v183, 0
    %193 = vmatpush.msra.mxu0 0.0
    %194 = vmatpush.msra.mxu0 0.0
    %195 = vmatpush.msra.mxu0 0.0
    %196 = vmatpush.msra.mxu0 0.0
    %197 = vmatpush.msra.mxu0 0.0
    %198 = vmatpush.msra.mxu0 0.0
    %199 = vmatpush.msra.mxu0 0.0
    %200 = vmatpush.msra.mxu0 0.0
    %201 = vmatpush.msra.mxu0 0.0
    %202 = vmatpush.msra.mxu0 0.0
    %203 = vmatpush.msra.mxu0 0.0
    %204 = vmatpush.msra.mxu0 0.0
    %205 = vmatpush.msra.mxu0 %v187
    %206 = vmatpush.msra.mxu0 %v186
    %207 = vmatpush.msra.mxu0 %v185
    %208 = vmatpush.msra.mxu0 %v184
    %209 = vmatmul.f32.gmra.mxu0 %v191
    %v210 = vpop.f32.mrf.mxu0
    %v211 = vadd.f32 %v189, %v210
    %212 = vdwg.mxu0
    %vm213 = vcmask 130048
    %v214 = vsel %vm213, %v211, -inf
    %215 = vmax.xlane.f32.xlu0 %v214
    %v216 = vpop.xlane.xlu0 %215
    %v217 = vsub.f32 %v211, %v216
    %v218 = vmul.f32 %v217, 1.442695
    %v219 = vpow.pop %v218
    %v220 = vsel %vm213, %v219, 0.0
    %221 = vadd.xlane.f32.xlu0 %v220
    %v222 = vpop.xlane.xlu0 %221
    %v223 = vrcp.pop %v222
    %v224 = vmul.f32 %v222, %v223
    %v225 = vsub.f32 1.0, %v224
    %v226 = vmul.f32 %v223, %v225
    %v227 = vadd.f32 %v223, %v226
    %vm228 = vweird.f32 %v222
    %vm229 = vweird.f32 %v223
    %vm230 = vmor %vm228, %vm229
    %v231 = vsel %vm230, %v223, %v227
    %v232 = vand.u32 2147483647, %v222
    %vm233 = vcmp.eq.f32.partialorder %v232, 8.507059e+37
    %v234 = vand.u32 %v222, 2147483648
    %v235 = vor.u32 1.1754944e-38, %v234
    %v236 = vsel %vm233, %v235, %v231
    %v237 = vmul.f32 %v219, %v236
    %v238 = vld [vmem:[#allocation5 + $0x80] sm:$0xff]
    %v239 = vld [vmem:[#allocation5 + $0x88] sm:$0xff]
    %v241 = vsel %vm213, %v237, 0
    %243 = vmatpush.msra.mxu0 0.0
    %244 = vmatpush.msra.mxu0 0.0
    %245 = vmatpush.msra.mxu0 0.0
    %246 = vmatpush.msra.mxu0 0.0
    %247 = vmatpush.msra.mxu0 0.0
    %248 = vmatpush.msra.mxu0 0.0
    %249 = vmatpush.msra.mxu0 0.0
    %250 = vmatpush.msra.mxu0 0.0
    %251 = vmatpush.msra.mxu0 0.0
    %252 = vmatpush.msra.mxu0 0.0
    %253 = vmatpush.msra.mxu0 0.0
    %254 = vmatpush.msra.mxu0 0.0
    %255 = vmatpush.msra.mxu0 0.0
    %256 = vmatpush.msra.mxu0 0.0
    %257 = vmatpush.msra.mxu0 %v239
    %258 = vmatpush.msra.mxu0 %v238
    %259 = vmatmul.f32.gmra.mxu0 %v241
    %v260 = vpop.f32.mrf.mxu0
    %v261 = vadd.f32 0.0, %v260
    %262 = vdwg.mxu0
    %v263 = vld [vmem:[#allocation5 + $0x118] sm:$0x1]
    %v264 = vld [vmem:[#allocation5 + $0x120] sm:$0x1]
    %v265 = vsel %vm47, %v261, 0.0
    %v266 = vrot.slane %v265, 4
    %v267 = vadd.f32 %v265, %v266
    %v268 = vrot.slane %v267, 2
    %v269 = vadd.f32 %v267, %v268
    %v270 = vrot.slane %v269, 1
    %v271 = vadd.f32 %v269, %v270
    %v272 = vmul.f32 %v271, %v87
    %v273 = vsub.f32 %v261, %v272
    %v274 = vmul.f32 %v273, %v273
    %v275 = vsel %vm47, %v274, 0.0
    %v276 = vrot.slane %v275, 4
    %v277 = vadd.f32 %v275, %v276
    %v278 = vrot.slane %v277, 2
    %v279 = vadd.f32 %v277, %v278
    %v280 = vrot.slane %v279, 1
    %v281 = vadd.f32 %v279, %v280
    %v282 = vmul.f32 %v281, %v87
    %v283 = vadd.f32 %v282, 1e-05
    %v284 = vrsqrt.pop %v283
    %v285 = vmul.f32 %v284, %v283
    %v286 = vmul.f32 %v285, %v284
    %v287 = vmul.f32 0.5, %v286
    %v288 = vsub.f32 1.5, %v287
    %v289 = vmul.f32 %v284, %v288
    %vm290 = vweird.f32 %v283
    %vm291 = vweird.f32 %v284
    %vm292 = vmor %vm290, %vm291
    %v293 = vsel %vm292, %v284, %v289
    %v294 = vmul.f32 %v263, %v293
    %v295 = vperm.slane %v294, 0
    %v296 = vmul.f32 %v273, %v295
    %v297 = vperm.slane %v264, 0
    %v298 = vadd.f32 %v296, %v297
    %v299 = vmax.f32 %v298, 0.0
    %v300 = vld [vmem:[#allocation5 + $0x90] sm:$0xff]
    %v301 = vld [vmem:[#allocation5 + $0x98] sm:$0xff]
    %v302 = vld [vmem:[#allocation5 + $0xa0] sm:$0xff]
    %v303 = vld [vmem:[#allocation5 + $0xa8] sm:$0xff]
    %v305 = vsel %vm47, %v299, 0
    %307 = vmatpush.msra.mxu0 0.0
    %308 = vmatpush.msra.mxu0 0.0
    %309 = vmatpush.msra.mxu0 0.0
    %310 = vmatpush.msra.mxu0 0.0
    %311 = vmatpush.msra.mxu0 0.0
    %312 = vmatpush.msra.mxu0 0.0
    %313 = vmatpush.msra.mxu0 0.0
    %314 = vmatpush.msra.mxu0 0.0
    %315 = vmatpush.msra.mxu0 0.0
    %316 = vmatpush.msra.mxu0 0.0
    %317 = vmatpush.msra.mxu0 0.0
    %318 = vmatpush.msra.mxu0 0.0
    %319 = vmatpush.msra.mxu0 %v303
    %320 = vmatpush.msra.mxu0 %v302
    %321 = vmatpush.msra.mxu0 %v301
    %322 = vmatpush.msra.mxu0 %v300
    %323 = vmatmul.f32.gmra.mxu0 %v305
    %v324 = vpop.f32.mrf.mxu0
    %v325 = vadd.f32 0.0, %v324
    %326 = vdwg.mxu0
    %v327 = vld [vmem:[#allocation5 + $0x128] sm:$0x1]
    %v328 = vld [vmem:[#allocation5 + $0x130] sm:$0x1]
    %v329 = vsel %vm73, %v325, 0.0
    %v330 = vrot.slane %v329, 4
    %v331 = vadd.f32 %v329, %v330
    %v332 = vrot.slane %v331, 2
    %v333 = vadd.f32 %v331, %v332
    %v334 = vrot.slane %v333, 1
    %v335 = vadd.f32 %v333, %v334
    %v336 = vmul.f32 %v335, %v87
    %v337 = vsub.f32 %v325, %v336
    %v338 = vmul.f32 %v337, %v337
    %v339 = vsel %vm73, %v338, 0.0
    %v340 = vrot.slane %v339, 4
    %v341 = vadd.f32 %v339, %v340
    %v342 = vrot.slane %v341, 2
    %v343 = vadd.f32 %v341, %v342
    %v344 = vrot.slane %v343, 1
    %v345 = vadd.f32 %v343, %v344
    %v346 = vmul.f32 %v345, %v87
    %v347 = vadd.f32 %v346, 1e-05
    %v348 = vrsqrt.pop %v347
    %v349 = vmul.f32 %v348, %v347
    %v350 = vmul.f32 %v349, %v348
    %v351 = vmul.f32 0.5, %v350
    %v352 = vsub.f32 1.5, %v351
    %v353 = vmul.f32 %v348, %v352
    %vm354 = vweird.f32 %v347
    %vm355 = vweird.f32 %v348
    %vm356 = vmor %vm354, %vm355
    %v357 = vsel %vm356, %v348, %v353
    %v358 = vmul.f32 %v327, %v357
    %v359 = vperm.slane %v358, 0
    %v360 = vmul.f32 %v337, %v359
    %v361 = vperm.slane %v328, 0
    %v362 = vadd.f32 %v360, %v361
    %v363 = vmax.f32 %v362, 0.0
    %v364 = vld [vmem:[#allocation5 + $0xb0] sm:$0xff]
    %v365 = vld [vmem:[#allocation5 + $0xb8] sm:$0xff]
    %v366 = vld [vmem:[#allocation5 + $0xc0] sm:$0xff]
    %v367 = vld [vmem:[#allocation5 + $0xc8] sm:$0xff]
    %v368 = vld [vmem:[#allocation5 + $0xd0] sm:$0xff]
    %v369 = vld [vmem:[#allocation5 + $0xd8] sm:$0xff]
    %v370 = vld [vmem:[#allocation5 + $0xe0] sm:$0xff]
    %v371 = vld [vmem:[#allocation5 + $0xe8] sm:$0xff]
    %v373 = vsel %vm73, %v363, 0
    %375 = vmatpush.msra.mxu0 0.0
    %376 = vmatpush.msra.mxu0 0.0
    %377 = vmatpush.msra.mxu0 0.0
    %378 = vmatpush.msra.mxu0 0.0
    %379 = vmatpush.msra.mxu0 0.0
    %380 = vmatpush.msra.mxu0 0.0
    %381 = vmatpush.msra.mxu0 0.0
    %382 = vmatpush.msra.mxu0 0.0
    %383 = vmatpush.msra.mxu0 %v371
    %384 = vmatpush.msra.mxu0 %v370
    %385 = vmatpush.msra.mxu0 %v369
    %386 = vmatpush.msra.mxu0 %v368
    %387 = vmatpush.msra.mxu0 %v367
    %388 = vmatpush.msra.mxu0 %v366
    %389 = vmatpush.msra.mxu0 %v365
    %390 = vmatpush.msra.mxu0 %v364
    %391 = vmatmul.f32.gmra.mxu0 %v373
    %v392 = vpop.f32.mrf.mxu0
    %v393 = vadd.f32 0.0, %v392
    %394 = vdwg.mxu0
    %v395 = vld [vmem:[#allocation5 + $0x138] sm:$0x1]
    %v396 = vld [vmem:[#allocation5 + $0x140] sm:$0x1]
    %v397 = vsel %vm47, %v393, 0.0
    %v398 = vrot.slane %v397, 4
    %v399 = vadd.f32 %v397, %v398
    %v400 = vrot.slane %v399, 2
    %v401 = vadd.f32 %v399, %v400
    %v402 = vrot.slane %v401, 1
    %v403 = vadd.f32 %v401, %v402
    %v404 = vmul.f32 %v403, %v87
    %v405 = vsub.f32 %v393, %v404
    %v406 = vmul.f32 %v405, %v405
    %v407 = vsel %vm47, %v406, 0.0
    %v408 = vrot.slane %v407, 4
    %v409 = vadd.f32 %v407, %v408
    %v410 = vrot.slane %v409, 2
    %v411 = vadd.f32 %v409, %v410
    %v412 = vrot.slane %v411, 1
    %v413 = vadd.f32 %v411, %v412
    %v414 = vmul.f32 %v413, %v87
    %v415 = vadd.f32 %v414, 1e-05
    %v416 = vrsqrt.pop %v415
    %v417 = vmul.f32 %v416, %v415
    %v418 = vmul.f32 %v417, %v416
    %v419 = vmul.f32 0.5, %v418
    %v420 = vsub.f32 1.5, %v419
    %v421 = vmul.f32 %v416, %v420
    %vm422 = vweird.f32 %v415
    %vm423 = vweird.f32 %v416
    %vm424 = vmor %vm422, %vm423
    %v425 = vsel %vm424, %v416, %v421
    %v426 = vmul.f32 %v395, %v425
    %v427 = vperm.slane %v426, 0
    %v428 = vmul.f32 %v405, %v427
    %v429 = vperm.slane %v396, 0
    %v430 = vadd.f32 %v428, %v429
    %431 = vrot.lane.b32.xlu0 %v237, 32
    %v432 = vpop.permute.xlu0 %431
    %v434 = vsel %vm47, %v430, %v432
    %vm435 = vcmask 392192
    %v436 = vsel %vm435, %v434, 0.0
    %437 = vst [vmem:[#allocation7] sm:$0xff] %v436
    // Predicated region
    $region18: #{tpu_custom_call.1} parent=1 // pred_check
      _
    $region19: #{tpu_custom_call.1} parent=1 // pred_check_branch
      %439 = sbr.rel (0) target = $region21
    $region20: #{tpu_custom_call.1} parent=1 // pred_region
      %441 = vsyncadd [#allocation4], 0
      %s443 = sshll.u32 [#allocation7], 4
      %s444 = int_to_ptr.vmem [resolvable:$true] %s443
      %s445 = sshll.u32 %s2, 4
      %s446 = int_to_ptr.hbm [resolvable:$true] %s445
      %448 = dma.vmem_to_hbm [thread:$0]  %s444, 128, %s446, [#allocation4]
    $region21: #{tpu_custom_call.1} parent=1 // pred_fallthru
      _
    // Predicated region
    $region22: #{tpu_custom_call.1} parent=1 // pred_check
      _
    $region23: #{tpu_custom_call.1} parent=1 // pred_check_branch
      %450 = sbr.rel (0) target = $region25
    $region24: #{tpu_custom_call.1} parent=1 // pred_region
      %452 = dma.done [#allocation4], 128
    $region25: #{tpu_custom_call.1} parent=1 // pred_fallthru
      _
    %453 = vsyncpa [#allocation3], 1
    %454 = vsyncpa [#allocation6], 1
    %455 = vsyncpa [#allocation4], 1

</llo_original>
